<compile_context>
chip_gen: v5e
topology: v5e:2x2
jax: 0.10.0
libtpu: 0.0.40
codegen_flags: <defaults>
</compile_context>

<pallas_src>
import math

import jax
import jax.numpy as jnp
from jax.experimental import pallas as pl
from jax.experimental.pallas import tpu as pltpu

N_EMBD = 4
NUM_EXPERTS = 8
TOP_K = 3

_LANE = 128
_TILE_CAP = 32768      # max lanes per grid step (amortizes ~0.35us/step overhead)
_TARGET_STEPS = 4      # aim for >=4 steps so v7x's 2 TensorCores each get >=2


def _round_up(x, m):
    return (x + m - 1) // m * m


def _router_kernel(xt_ref, w_ref, b_ref, noise_ref, probs_ref, idx_ref):
    """xt: (D, TN) f32, w: (2E, D) f32, b: (2E, 1) f32, noise: (E, TN) bf16,
    probs: (E, TN) f32, idx: (TOP_K, TN) i32."""
    x_t = xt_ref[...]
    w = w_ref[...]
    noise = noise_ref[...].astype(jnp.float32)
    n_exp = NUM_EXPERTS

    # Fused route+noise projection: D broadcast-FMAs on the VPU (no MXU).
    acc = b_ref[...]                                            # (2E, 1) broadcasts
    for d in range(N_EMBD):
        acc = acc + w[:, d:d + 1] * x_t[d:d + 1, :]             # (2E, TN)

    logits = acc[:n_exp, :]                                     # (E, TN)
    noise_logits = acc[n_exp:, :]                               # (E, TN)

    # softplus (matches F.softplus, beta=1, threshold=20)
    sp = jnp.where(noise_logits > 20.0, noise_logits,
                   jnp.log1p(jnp.exp(jnp.minimum(noise_logits, 20.0))))
    noisy = logits + noise * sp                                 # (E, TN)

    row = jax.lax.broadcasted_iota(jnp.int32, noisy.shape, 0)
    neg_inf = jnp.float32(-jnp.inf)

    # Iterative top-k over the tiny, static expert (sublane) axis.
    working = noisy
    selected = jnp.zeros(noisy.shape, dtype=jnp.bool_)
    idx_rows = []
    row_max = None
    for k in range(TOP_K):
        m_k = jnp.max(working, axis=0, keepdims=True)           # (1, TN)
        if k == 0:
            row_max = m_k                                       # top-1 max == softmax shift
        i_k = jnp.min(jnp.where(working == m_k, row, n_exp),
                      axis=0, keepdims=True).astype(jnp.int32)  # (1, TN)
        hit = row == i_k
        selected = jnp.logical_or(selected, hit)
        working = jnp.where(hit, neg_inf, working)
        idx_rows.append(i_k)

    # One lane-dense (TOP_K, TN) store instead of TOP_K sublane-masked stores.
    idx_ref[...] = jnp.concatenate(idx_rows, axis=0)

    # Sparse softmax over the selected experts (exp(-inf) == 0); exact division.
    sparse = jnp.where(selected, noisy, neg_inf)
    exp_s = jnp.exp(sparse - row_max)
    probs_ref[...] = exp_s / jnp.sum(exp_s, axis=0, keepdims=True)


@jax.jit
def noisy_topk_router(x, w_route, b_route, w_noise, b_noise, seed):
    """x: (B, T, n_embd); weights in nn.Linear layout (num_experts, n_embd).

    Returns (router_output (B, T, E) float32, indices (B, T, top_k) int32).
    """
    B, T, D = x.shape
    E = NUM_EXPERTS
    N = B * T

    # Tile sizing: as big as possible (per-grid-step overhead dominates small
    # tiles) but split into >= _TARGET_STEPS steps when N allows it (v7x megacore).
    tile_from_split = _round_up(-(-N // _TARGET_STEPS), _LANE)
    TILE_N = max(_LANE, min(_TILE_CAP, tile_from_split))
    N_pad = _round_up(N, TILE_N)
    grid = (N_pad // TILE_N,)

    # tokens-on-lanes: (D, N_pad).  The transposes here (and on the outputs)
    # exist only to preserve the PyTorch (B, T, ...) interface; a downstream
    # dispatch kernel should consume the expert-major (E, N)/(TOP_K, N) form.
    x_t = x.reshape(N, D).astype(jnp.float32).T
    if N_pad != N:
        x_t = jnp.pad(x_t, ((0, 0), (0, N_pad - N)))

    # Fuse the two projections: one (2E, D) weight, one (2E, 1) bias.
    w_fused = jnp.concatenate([w_route, w_noise], axis=0).astype(jnp.float32)
    b_fused = jnp.concatenate([b_route, b_noise],
                              axis=0).astype(jnp.float32).reshape(2 * E, 1)

    # TODO(synk): replace streamed noise with in-kernel pltpu.stateful_normal on
    # hardware that supports it; here noise is host-generated (bf16, expert-major,
    # grid-invariant) and streamed per tile.
    noise_t = jax.random.normal(jax.random.PRNGKey(seed), (E, N_pad),
                                dtype=jnp.bfloat16)

    per_step_bytes = (D * TILE_N * 4          # x tile
                      + E * TILE_N * 2        # noise tile (bf16)
                      + E * TILE_N * 4        # probs tile
                      + TOP_K * TILE_N * 4    # idx tile
                      + 2 * E * (D + 1) * 4)  # fused weights + bias
    vmem_limit = int(min(64 << 20, max(32 << 20, 3 * per_step_bytes)))

    cost = pl.CostEstimate(
        flops=2 * N_pad * D * 2 * E + 16 * N_pad * E,
        transcendentals=3 * N_pad * E,
        bytes_accessed=(int(x_t.size) * 4 + int(w_fused.size) * 4
                        + int(b_fused.size) * 4 + int(noise_t.size) * 2
                        + N_pad * E * 4 + N_pad * TOP_K * 4),
    )

    probs_t, idx_t = pl.pallas_call(
        _router_kernel,
        out_shape=(
            jax.ShapeDtypeStruct((E, N_pad), jnp.float32),
            jax.ShapeDtypeStruct((TOP_K, N_pad), jnp.int32),
        ),
        grid_spec=pltpu.PrefetchScalarGridSpec(
            num_scalar_prefetch=0,
            grid=grid,
            in_specs=[
                pl.BlockSpec((D, TILE_N), lambda i: (0, i)),
                pl.BlockSpec((2 * E, D), lambda i: (0, 0)),
                pl.BlockSpec((2 * E, 1), lambda i: (0, 0)),
                pl.BlockSpec((E, TILE_N), lambda i: (0, i)),
            ],
            out_specs=(
                pl.BlockSpec((E, TILE_N), lambda i: (0, i)),
                pl.BlockSpec((TOP_K, TILE_N), lambda i: (0, i)),
            ),
        ),
        compiler_params=pltpu.CompilerParams(
            dimension_semantics=("parallel",),
            vmem_limit_bytes=vmem_limit),
        cost_estimate=cost,
    )(x_t, w_fused, b_fused, noise_t)

    probs = probs_t[:, :N].T.reshape(B, T, E)
    idx = idx_t[:, :N].T.reshape(B, T, TOP_K)
    return probs, idx


if __name__ == "__main__":
    key = jax.random.PRNGKey(0)
    kx, k1, k2, k3, k4 = jax.random.split(key, 5)

    bound = 1.0 / math.sqrt(N_EMBD)
    # nn.Linear parameter layout: (out_features, in_features)
    w_route = jax.random.uniform(k1, (NUM_EXPERTS, N_EMBD),
                                 minval=-bound, maxval=bound, dtype=jnp.float32)
    b_route = jax.random.uniform(k2, (NUM_EXPERTS,),
                                 minval=-bound, maxval=bound, dtype=jnp.float32)
    w_noise = jax.random.uniform(k3, (NUM_EXPERTS, N_EMBD),
                                 minval=-bound, maxval=bound, dtype=jnp.float32)
    b_noise = jax.random.uniform(k4, (NUM_EXPERTS,),
                                 minval=-bound, maxval=bound, dtype=jnp.float32)

    # mh_output = torch.randn(2, 8, n_embd)
    x = jax.random.normal(kx, (2, 8, N_EMBD), dtype=jnp.float32)

    router_out, indices = noisy_topk_router(
        x, w_route, b_route, w_noise, b_noise, seed=0)
    jax.block_until_ready((router_out, indices))

    # light sanity checks
    assert router_out.shape == (2, 8, NUM_EXPERTS)
    assert indices.shape == (2, 8, TOP_K)
    row_sums = jnp.sum(router_out, axis=-1)
    assert jnp.allclose(row_sums, 1.0, atol=1e-4)
    nonzeros = jnp.sum(router_out > 0.0, axis=-1)
    assert jnp.all(nonzeros == TOP_K)
    assert jnp.all((indices >= 0) & (indices < NUM_EXPERTS))
    # every reported index points at one of the selected (nonzero) probabilities
    probs_at_idx = jnp.take_along_axis(router_out, indices, axis=-1)
    assert jnp.all(probs_at_idx > 0.0)

    print("KERNEL_OK")
</pallas_src>

<mosaic_0001>
module attributes {stable_mosaic.version = 11 : i64} {
  func.func @_router_kernel(%arg0: i32, %arg1: memref<4x128xf32, #tpu.memory_space<vmem>>, %arg2: memref<16x4xf32, #tpu.memory_space<vmem>>, %arg3: memref<16x1xf32, #tpu.memory_space<vmem>>, %arg4: memref<8x128xbf16, #tpu.memory_space<vmem>>, %arg5: memref<8x128xf32, #tpu.memory_space<vmem>>, %arg6: memref<3x128xi32, #tpu.memory_space<vmem>>) attributes {dimension_semantics = [#tpu.dimension_semantics<parallel>], iteration_bounds = array<i64: 1>, scalar_prefetch = 0 : i64, scratch_operands = 0 : i64, tpu.core_type = #tpu.core_type<tc>, window_params = [{transform_indices = @transform_0, window_bounds = array<i64: 4, 128>}, {pipeline_mode = #tpu.pipeline_mode<synchronous>, transform_indices = @transform_1, window_bounds = array<i64: 16, 4>}, {pipeline_mode = #tpu.pipeline_mode<synchronous>, transform_indices = @transform_2, window_bounds = array<i64: 16, 1>}, {transform_indices = @transform_3, window_bounds = array<i64: 8, 128>}, {transform_indices = @transform_4, window_bounds = array<i64: 8, 128>}, {transform_indices = @transform_5, window_bounds = array<i64: 3, 128>}]} {
    %c0 = arith.constant 0 : index
    %c0_0 = arith.constant 0 : index
    %0 = vector.load %arg1[%c0, %c0_0] : memref<4x128xf32, #tpu.memory_space<vmem>>, vector<4x128xf32>
    %c0_1 = arith.constant 0 : index
    %c0_2 = arith.constant 0 : index
    %1 = vector.load %arg2[%c0_1, %c0_2] : memref<16x4xf32, #tpu.memory_space<vmem>>, vector<16x4xf32>
    %c0_3 = arith.constant 0 : index
    %c0_4 = arith.constant 0 : index
    %2 = vector.load %arg4[%c0_3, %c0_4] : memref<8x128xbf16, #tpu.memory_space<vmem>>, vector<8x128xbf16>
    %3 = arith.extf %2 : vector<8x128xbf16> to vector<8x128xf32>
    %c0_5 = arith.constant 0 : index
    %c0_6 = arith.constant 0 : index
    %4 = vector.load %arg3[%c0_5, %c0_6] : memref<16x1xf32, #tpu.memory_space<vmem>>, vector<16x1xf32>
    %5 = vector.extract_strided_slice %1 {offsets = [0, 0], sizes = [16, 1], strides = [1, 1]} : vector<16x4xf32> to vector<16x1xf32>
    %6 = vector.extract_strided_slice %0 {offsets = [0, 0], sizes = [1, 128], strides = [1, 1]} : vector<4x128xf32> to vector<1x128xf32>
    %7 = vector.broadcast %5 : vector<16x1xf32> to vector<16x128xf32>
    %8 = vector.broadcast %6 : vector<1x128xf32> to vector<16x128xf32>
    %9 = arith.mulf %7, %8 : vector<16x128xf32>
    %10 = vector.broadcast %4 : vector<16x1xf32> to vector<16x128xf32>
    %11 = arith.addf %10, %9 : vector<16x128xf32>
    %12 = vector.extract_strided_slice %1 {offsets = [0, 1], sizes = [16, 1], strides = [1, 1]} : vector<16x4xf32> to vector<16x1xf32>
    %13 = vector.extract_strided_slice %0 {offsets = [1, 0], sizes = [1, 128], strides = [1, 1]} : vector<4x128xf32> to vector<1x128xf32>
    %14 = vector.broadcast %12 : vector<16x1xf32> to vector<16x128xf32>
    %15 = vector.broadcast %13 : vector<1x128xf32> to vector<16x128xf32>
    %16 = arith.mulf %14, %15 : vector<16x128xf32>
    %17 = arith.addf %11, %16 : vector<16x128xf32>
    %18 = vector.extract_strided_slice %1 {offsets = [0, 2], sizes = [16, 1], strides = [1, 1]} : vector<16x4xf32> to vector<16x1xf32>
    %19 = vector.extract_strided_slice %0 {offsets = [2, 0], sizes = [1, 128], strides = [1, 1]} : vector<4x128xf32> to vector<1x128xf32>
    %20 = vector.broadcast %18 : vector<16x1xf32> to vector<16x128xf32>
    %21 = vector.broadcast %19 : vector<1x128xf32> to vector<16x128xf32>
    %22 = arith.mulf %20, %21 : vector<16x128xf32>
    %23 = arith.addf %17, %22 : vector<16x128xf32>
    %24 = vector.extract_strided_slice %1 {offsets = [0, 3], sizes = [16, 1], strides = [1, 1]} : vector<16x4xf32> to vector<16x1xf32>
    %25 = vector.extract_strided_slice %0 {offsets = [3, 0], sizes = [1, 128], strides = [1, 1]} : vector<4x128xf32> to vector<1x128xf32>
    %26 = vector.broadcast %24 : vector<16x1xf32> to vector<16x128xf32>
    %27 = vector.broadcast %25 : vector<1x128xf32> to vector<16x128xf32>
    %28 = arith.mulf %26, %27 : vector<16x128xf32>
    %29 = arith.addf %23, %28 : vector<16x128xf32>
    %30 = vector.extract_strided_slice %29 {offsets = [0, 0], sizes = [8, 128], strides = [1, 1]} : vector<16x128xf32> to vector<8x128xf32>
    %31 = vector.extract_strided_slice %29 {offsets = [8, 0], sizes = [8, 128], strides = [1, 1]} : vector<16x128xf32> to vector<8x128xf32>
    %cst = arith.constant 2.000000e+01 : f32
    %32 = vector.broadcast %cst : f32 to vector<8x128xf32>
    %33 = arith.cmpf ogt, %31, %32 : vector<8x128xf32>
    %cst_7 = arith.constant 2.000000e+01 : f32
    %34 = vector.broadcast %cst_7 : f32 to vector<8x128xf32>
    %35 = arith.minimumf %31, %34 : vector<8x128xf32>
    %36 = math.exp %35 : vector<8x128xf32>
    %37 = math.log1p %36 : vector<8x128xf32>
    %38 = arith.select %33, %31, %37 : vector<8x128xi1>, vector<8x128xf32>
    %39 = arith.mulf %3, %38 : vector<8x128xf32>
    %40 = arith.addf %30, %39 : vector<8x128xf32>
    %41 = tpu.iota {dimensions = array<i32: 0>} : vector<8x128xi32>
    %false = arith.constant false
    %42 = vector.broadcast %false : i1 to vector<8x128xi1>
    %cst_8 = arith.constant dense<0xFF800000> : vector<128xf32>
    %43 = vector.multi_reduction <maximumf>, %40, %cst_8 [0] : vector<8x128xf32> to vector<128xf32>
    %44 = vector.shape_cast %43 : vector<128xf32> to vector<1x128xf32>
    %45 = vector.broadcast %44 : vector<1x128xf32> to vector<8x128xf32>
    %46 = arith.cmpf oeq, %40, %45 : vector<8x128xf32>
    %c8_i32 = arith.constant 8 : i32
    %47 = vector.broadcast %c8_i32 : i32 to vector<8x128xi32>
    %48 = arith.select %46, %41, %47 : vector<8x128xi1>, vector<8x128xi32>
    %cst_9 = arith.constant dense<2147483647> : vector<128xi32>
    %49 = vector.multi_reduction <minsi>, %48, %cst_9 [0] : vector<8x128xi32> to vector<128xi32>
    %50 = vector.shape_cast %49 : vector<128xi32> to vector<1x128xi32>
    %51 = vector.broadcast %50 : vector<1x128xi32> to vector<8x128xi32>
    %52 = arith.cmpi eq, %41, %51 : vector<8x128xi32>
    %53 = arith.ori %42, %52 : vector<8x128xi1>
    %cst_10 = arith.constant 0xFF800000 : f32
    %54 = vector.broadcast %cst_10 : f32 to vector<8x128xf32>
    %55 = arith.select %52, %54, %40 : vector<8x128xi1>, vector<8x128xf32>
    %cst_11 = arith.constant dense<0xFF800000> : vector<128xf32>
    %56 = vector.multi_reduction <maximumf>, %55, %cst_11 [0] : vector<8x128xf32> to vector<128xf32>
    %57 = vector.shape_cast %56 : vector<128xf32> to vector<1x128xf32>
    %58 = vector.broadcast %57 : vector<1x128xf32> to vector<8x128xf32>
    %59 = arith.cmpf oeq, %55, %58 : vector<8x128xf32>
    %c8_i32_12 = arith.constant 8 : i32
    %60 = vector.broadcast %c8_i32_12 : i32 to vector<8x128xi32>
    %61 = arith.select %59, %41, %60 : vector<8x128xi1>, vector<8x128xi32>
    %cst_13 = arith.constant dense<2147483647> : vector<128xi32>
    %62 = vector.multi_reduction <minsi>, %61, %cst_13 [0] : vector<8x128xi32> to vector<128xi32>
    %63 = vector.shape_cast %62 : vector<128xi32> to vector<1x128xi32>
    %64 = vector.broadcast %63 : vector<1x128xi32> to vector<8x128xi32>
    %65 = arith.cmpi eq, %41, %64 : vector<8x128xi32>
    %66 = arith.ori %53, %65 : vector<8x128xi1>
    %cst_14 = arith.constant 0xFF800000 : f32
    %67 = vector.broadcast %cst_14 : f32 to vector<8x128xf32>
    %68 = arith.select %65, %67, %55 : vector<8x128xi1>, vector<8x128xf32>
    %cst_15 = arith.constant dense<0xFF800000> : vector<128xf32>
    %69 = vector.multi_reduction <maximumf>, %68, %cst_15 [0] : vector<8x128xf32> to vector<128xf32>
    %70 = vector.shape_cast %69 : vector<128xf32> to vector<1x128xf32>
    %71 = vector.broadcast %70 : vector<1x128xf32> to vector<8x128xf32>
    %72 = arith.cmpf oeq, %68, %71 : vector<8x128xf32>
    %c8_i32_16 = arith.constant 8 : i32
    %73 = vector.broadcast %c8_i32_16 : i32 to vector<8x128xi32>
    %74 = arith.select %72, %41, %73 : vector<8x128xi1>, vector<8x128xi32>
    %cst_17 = arith.constant dense<2147483647> : vector<128xi32>
    %75 = vector.multi_reduction <minsi>, %74, %cst_17 [0] : vector<8x128xi32> to vector<128xi32>
    %76 = vector.shape_cast %75 : vector<128xi32> to vector<1x128xi32>
    %77 = vector.broadcast %76 : vector<1x128xi32> to vector<8x128xi32>
    %78 = arith.cmpi eq, %41, %77 : vector<8x128xi32>
    %79 = arith.ori %66, %78 : vector<8x128xi1>
    %80 = tpu.concatenate %50, %63, %76 in 0 : vector<1x128xi32>, vector<1x128xi32>, vector<1x128xi32> -> vector<3x128xi32>
    %c0_18 = arith.constant 0 : index
    %c0_19 = arith.constant 0 : index
    %81 = vector.load %arg6[%c0_18, %c0_19] : memref<3x128xi32, #tpu.memory_space<vmem>>, vector<3x128xi32>
    tpu.vector_store %arg6[%c0_18, %c0_19], %80 {strides = array<i32>} : memref<3x128xi32, #tpu.memory_space<vmem>>, vector<3x128xi32>,
    %cst_20 = arith.constant 0xFF800000 : f32
    %82 = vector.broadcast %cst_20 : f32 to vector<8x128xf32>
    %83 = arith.select %79, %40, %82 : vector<8x128xi1>, vector<8x128xf32>
    %84 = vector.broadcast %44 : vector<1x128xf32> to vector<8x128xf32>
    %85 = arith.subf %83, %84 : vector<8x128xf32>
    %86 = math.exp %85 : vector<8x128xf32>
    %cst_21 = arith.constant dense<0.000000e+00> : vector<128xf32>
    %87 = vector.multi_reduction <add>, %86, %cst_21 [0] : vector<8x128xf32> to vector<128xf32>
    %88 = vector.shape_cast %87 : vector<128xf32> to vector<1x128xf32>
    %89 = vector.broadcast %88 : vector<1x128xf32> to vector<8x128xf32>
    %90 = arith.divf %86, %89 : vector<8x128xf32>
    %c0_22 = arith.constant 0 : index
    %c0_23 = arith.constant 0 : index
    %91 = vector.load %arg5[%c0_22, %c0_23] : memref<8x128xf32, #tpu.memory_space<vmem>>, vector<8x128xf32>
    tpu.vector_store %arg5[%c0_22, %c0_23], %90 {strides = array<i32>} : memref<8x128xf32, #tpu.memory_space<vmem>>, vector<8x128xf32>,
    return
  }
  func.func @transform_0(%arg0: i32) -> (i32, i32) {
    %c0_i32 = arith.constant 0 : i32
    %c0_i32_0 = arith.constant 0 : i32
    return %c0_i32, %arg0 : i32, i32
  }
  func.func @transform_1(%arg0: i32) -> (i32, i32) {
    %c0_i32 = arith.constant 0 : i32
    %c0_i32_0 = arith.constant 0 : i32
    %c0_i32_1 = arith.constant 0 : i32
    return %c0_i32, %c0_i32_0 : i32, i32
  }
  func.func @transform_2(%arg0: i32) -> (i32, i32) {
    %c0_i32 = arith.constant 0 : i32
    %c0_i32_0 = arith.constant 0 : i32
    %c0_i32_1 = arith.constant 0 : i32
    return %c0_i32, %c0_i32_0 : i32, i32
  }
  func.func @transform_3(%arg0: i32) -> (i32, i32) {
    %c0_i32 = arith.constant 0 : i32
    %c0_i32_0 = arith.constant 0 : i32
    return %c0_i32, %arg0 : i32, i32
  }
  func.func @transform_4(%arg0: i32) -> (i32, i32) {
    %c0_i32 = arith.constant 0 : i32
    %c0_i32_0 = arith.constant 0 : i32
    return %c0_i32, %arg0 : i32, i32
  }
  func.func @transform_5(%arg0: i32) -> (i32, i32) {
    %c0_i32 = arith.constant 0 : i32
    %c0_i32_0 = arith.constant 0 : i32
    return %c0_i32, %arg0 : i32, i32
  }
}

</mosaic_0001>

<llo_original>
// kernel: noisy_topk_router.1
$region0: #{noisy_topk_router.1}
  #allocation0 [shape = 'u32[]', space=smem, size = 0x4, offset = 0x4, fixed_abs, tag = 'smem constant byte address 0x4 - core index']
  #allocation1 [shape = 'u32[72,128]{1,0:T(1,128)}', space=vmem, size = 0x9000, scoped, tag = 'internal scratch']
  %s0 = inlined_call_operand.vmem [shape: f32[4,128], index: 0, kind: input, shape index: {}]
  %s1 = inlined_call_operand.vmem [shape: f32[16,4], index: 1, kind: input, shape index: {}]
  %s2 = inlined_call_operand.vmem [shape: f32[16,1], index: 2, kind: input, shape index: {}]
  %s3 = inlined_call_operand.vmem [shape: bf16[8,128], index: 3, kind: input, shape index: {}]
  %s4 = inlined_call_operand.vmem [shape: f32[8,128], index: 4, kind: output, shape index: {0}]
  %s5 = inlined_call_operand.vmem [shape: s32[3,128], index: 5, kind: output, shape index: {1}]
  %6 = xla_tuple %s4, %s5
  %s7 = sld [smem:[#allocation0]]
  $region34: #{noisy_topk_router.1} parent=0
    _
  %s9 = ssub.s32 1, %s7
  %s10 = scalar_select 0, %s9, %s7
  // Predicated region
  $region2: #{noisy_topk_router.1} parent=0 // pred_check
    _
  $region3: #{noisy_topk_router.1} parent=0 // pred_check_branch
    %12 = sbr.rel (0) target = $region5
  $region4: #{noisy_topk_router.1} parent=0 // pred_region
    _
  $region5: #{noisy_topk_router.1} parent=0 // pred_fallthru
    _
  // Predicated region
  $region6: #{noisy_topk_router.1} parent=0 // pred_check
    _
  $region7: #{noisy_topk_router.1} parent=0 // pred_check_branch
    %14 = sbr.rel (0) target = $region9
  $region8: #{noisy_topk_router.1} parent=0 // pred_region
    _
  $region9: #{noisy_topk_router.1} parent=0 // pred_fallthru
    _
  // Predicated region
  $region10: #{noisy_topk_router.1} parent=0 // pred_check
    _
  $region11: #{noisy_topk_router.1} parent=0 // pred_check_branch
    %16 = sbr.rel (0) target = $region13
  $region12: #{noisy_topk_router.1} parent=0 // pred_region
    _
  $region13: #{noisy_topk_router.1} parent=0 // pred_fallthru
    _
  // Predicated region
  $region14: #{noisy_topk_router.1} parent=0 // pred_check
    _
  $region15: #{noisy_topk_router.1} parent=0 // pred_check_branch
    %18 = sbr.rel (0) target = $region17
  $region16: #{noisy_topk_router.1} parent=0 // pred_region
    _
  $region17: #{noisy_topk_router.1} parent=0 // pred_fallthru
    _
  %v19 = vld [vmem:[%s0] sm:$0xf]
  %v20 = vld [vmem:[%s1] sm:$0xff]
  %v21 = vld [vmem:[%s1 + $0x8] sm:$0xff]
  %v22 = vld [vmem:[%s3] sm:$0xf]
  %v23 = vunpack.c.l.bf16 %v22
  %v24 = vld [vmem:[%s2] sm:$0xff]
  %v25 = vld [vmem:[%s2 + $0x8] sm:$0xff]
  %27 = vset.pattern.permute.xlu0 0
  %28 = vperm.xlu0 %27, %v20
  %v29 = vpop.permute.xlu0 %28
  %32 = vset.pattern.permute.xlu0 0
  %33 = vperm.xlu0 %32, %v21
  %v34 = vpop.permute.xlu0 %33
  %v36 = vperm.slane %v19, 0
  %v37 = vmul.f32 %v29, %v36
  %v38 = vmul.f32 %v34, %v36
  %40 = vset.pattern.permute.xlu0 0
  %41 = vperm.xlu0 %40, %v24
  %v42 = vpop.permute.xlu0 %41
  %45 = vset.pattern.permute.xlu0 0
  %46 = vperm.xlu0 %45, %v25
  %v47 = vpop.permute.xlu0 %46
  %v49 = vadd.f32 %v42, %v37
  %v50 = vadd.f32 %v47, %v38
  %51 = vset.pattern.permute.xlu0 1
  %52 = vperm.xlu0 %51, %v20
  %v53 = vpop.permute.xlu0 %52
  %55 = vset.pattern.permute.xlu0 1
  %56 = vperm.xlu0 %55, %v21
  %v57 = vpop.permute.xlu0 %56
  %v59 = vperm.slane %v19, 1
  %v60 = vmul.f32 %v53, %v59
  %v61 = vmul.f32 %v57, %v59
  %v62 = vadd.f32 %v49, %v60
  %v63 = vadd.f32 %v50, %v61
  %64 = vset.pattern.permute.xlu0 2
  %65 = vperm.xlu0 %64, %v20
  %v66 = vpop.permute.xlu0 %65
  %68 = vset.pattern.permute.xlu0 2
  %69 = vperm.xlu0 %68, %v21
  %v70 = vpop.permute.xlu0 %69
  %v72 = vperm.slane %v19, 2
  %v73 = vmul.f32 %v66, %v72
  %v74 = vmul.f32 %v70, %v72
  %v75 = vadd.f32 %v62, %v73
  %v76 = vadd.f32 %v63, %v74
  %77 = vset.pattern.permute.xlu0 3
  %78 = vperm.xlu0 %77, %v20
  %v79 = vpop.permute.xlu0 %78
  %81 = vset.pattern.permute.xlu0 3
  %82 = vperm.xlu0 %81, %v21
  %v83 = vpop.permute.xlu0 %82
  %v85 = vperm.slane %v19, 3
  %v86 = vmul.f32 %v79, %v85
  %v87 = vmul.f32 %v83, %v85
  %v88 = vadd.f32 %v75, %v86
  %v89 = vadd.f32 %v76, %v87
  %vm90 = vcmp.gt.f32.partialorder %v89, 20.0
  %v91 = vmin.f32 %v89, 20.0
  %v92 = vmul.f32 %v91, 1.442695
  %v93 = vpow.pop %v92
  %v94 = vadd.f32 %v93, 1.0
  %v95 = vlog2.pop %v94
  %v96 = vmul.f32 %v95, 0.6931472
  %v97 = vmul.f32 -0.5, %v93
  %v98 = vadd.f32 %v97, 1.0
  %v99 = vmul.f32 %v98, %v93
  %v100 = vand.u32 2147483647, %v93
  %vm101 = vcmp.lt.f32.partialorder %v100, 0.0004427343
  %v102 = vsel %vm101, %v99, %v96
  %v103 = vsel %vm90, %v89, %v102
  %v104 = vmul.f32 %v23, %v103
  %v105 = vadd.f32 %v88, %v104
  %v106 = vlaneseq
  %v107 = vshrl.u32 %v106, 7
  %v108 = vrot.slane %v105, 4
  %v109 = vmax.f32 %v105, %v108
  %v110 = vrot.slane %v109, 2
  %v111 = vmax.f32 %v109, %v110
  %v112 = vrot.slane %v111, 1
  %v113 = vmax.f32 %v111, %v112
  %vm114 = vcmp.eq.f32.partialorder %v105, %v113
  %v115 = vsel %vm114, %v107, 8
  %v116 = vrot.slane %v115, 4
  %vm117 = vcmp.lt.s32.totalorder %v115, %v116
  %v118 = vsel %vm117, %v115, %v116
  %v119 = vrot.slane %v118, 2
  %vm120 = vcmp.lt.s32.totalorder %v118, %v119
  %v121 = vsel %vm120, %v118, %v119
  %v122 = vrot.slane %v121, 1
  %vm123 = vcmp.lt.s32.totalorder %v121, %v122
  %v124 = vsel %vm123, %v121, %v122
  %vm125 = vcmp.eq.s32.totalorder %v107, %v124
  %v126 = vsel %vm125, -inf, %v105
  %v127 = vrot.slane %v126, 4
  %v128 = vmax.f32 %v126, %v127
  %v129 = vrot.slane %v128, 2
  %v130 = vmax.f32 %v128, %v129
  %v131 = vrot.slane %v130, 1
  %v132 = vmax.f32 %v130, %v131
  %vm133 = vcmp.eq.f32.partialorder %v126, %v132
  %v134 = vsel %vm133, %v107, 8
  %v135 = vrot.slane %v134, 4
  %vm136 = vcmp.lt.s32.totalorder %v134, %v135
  %v137 = vsel %vm136, %v134, %v135
  %v138 = vrot.slane %v137, 2
  %vm139 = vcmp.lt.s32.totalorder %v137, %v138
  %v140 = vsel %vm139, %v137, %v138
  %v141 = vrot.slane %v140, 1
  %vm142 = vcmp.lt.s32.totalorder %v140, %v141
  %v143 = vsel %vm142, %v140, %v141
  %vm144 = vcmp.eq.s32.totalorder %v107, %v143
  %vm145 = vmor %vm125, %vm144
  %v146 = vsel %vm144, -inf, %v126
  %v147 = vrot.slane %v146, 4
  %v148 = vmax.f32 %v146, %v147
  %v149 = vrot.slane %v148, 2
  %v150 = vmax.f32 %v148, %v149
  %v151 = vrot.slane %v150, 1
  %v152 = vmax.f32 %v150, %v151
  %vm153 = vcmp.eq.f32.partialorder %v146, %v152
  %v154 = vsel %vm153, %v107, 8
  %v155 = vrot.slane %v154, 4
  %vm156 = vcmp.lt.s32.totalorder %v154, %v155
  %v157 = vsel %vm156, %v154, %v155
  %v158 = vrot.slane %v157, 2
  %vm159 = vcmp.lt.s32.totalorder %v157, %v158
  %v160 = vsel %vm159, %v157, %v158
  %v161 = vrot.slane %v160, 1
  %vm162 = vcmp.lt.s32.totalorder %v160, %v161
  %v163 = vsel %vm162, %v160, %v161
  %vm164 = vcmp.eq.s32.totalorder %v107, %v163
  %vm165 = vmor %vm145, %vm164
  %vm166 = vcmask 1040384
  %v167 = vsel %vm166, %v124, %v143
  %vm168 = vcmask 1041408
  %v169 = vsel %vm168, %v167, %v163
  %170 = vst [vmem:[%s5] sm:$0x7] %v169
  %v171 = vsel %vm165, %v105, -inf
  %v172 = vsub.f32 %v171, %v113
  %v173 = vmul.f32 %v172, 1.442695
  %v174 = vpow.pop %v173
  %v175 = vrot.slane %v174, 4
  %v176 = vadd.f32 %v174, %v175
  %v177 = vrot.slane %v176, 2
  %v178 = vadd.f32 %v176, %v177
  %v179 = vrot.slane %v178, 1
  %v180 = vadd.f32 %v178, %v179
  %v181 = vrcp.pop %v180
  %v182 = vmul.f32 %v180, %v181
  %v183 = vsub.f32 1.0, %v182
  %v184 = vmul.f32 %v181, %v183
  %v185 = vadd.f32 %v181, %v184
  %vm186 = vweird.f32 %v180
  %vm187 = vweird.f32 %v181
  %vm188 = vmor %vm186, %vm187
  %v189 = vsel %vm188, %v181, %v185
  %v190 = vand.u32 2147483647, %v180
  %vm191 = vcmp.eq.f32.partialorder %v190, 8.507059e+37
  %v192 = vand.u32 %v180, 2147483648
  %v193 = vor.u32 1.1754944e-38, %v192
  %v194 = vsel %vm191, %v193, %v189
  %v195 = vmul.f32 %v174, %v194
  %196 = vst [vmem:[%s4] sm:$0xff] %v195
  // Predicated region
  $region18: #{noisy_topk_router.1} parent=0 // pred_check
    _
  $region19: #{noisy_topk_router.1} parent=0 // pred_check_branch
    %198 = sbr.rel (0) target = $region21
  $region20: #{noisy_topk_router.1} parent=0 // pred_region
    _
  $region21: #{noisy_topk_router.1} parent=0 // pred_fallthru
    _
  // Predicated region
  $region22: #{noisy_topk_router.1} parent=0 // pred_check
    _
  $region23: #{noisy_topk_router.1} parent=0 // pred_check_branch
    %200 = sbr.rel (0) target = $region25
  $region24: #{noisy_topk_router.1} parent=0 // pred_region
    _
  $region25: #{noisy_topk_router.1} parent=0 // pred_fallthru
    _
  // Predicated region
  $region26: #{noisy_topk_router.1} parent=0 // pred_check
    _
  $region27: #{noisy_topk_router.1} parent=0 // pred_check_branch
    %202 = sbr.rel (0) target = $region29
  $region28: #{noisy_topk_router.1} parent=0 // pred_region
    _
  $region29: #{noisy_topk_router.1} parent=0 // pred_fallthru
    _
  // Predicated region
  $region30: #{noisy_topk_router.1} parent=0 // pred_check
    _
  $region31: #{noisy_topk_router.1} parent=0 // pred_check_branch
    %204 = sbr.rel (0) target = $region33
  $region32: #{noisy_topk_router.1} parent=0 // pred_region
    _
  $region33: #{noisy_topk_router.1} parent=0 // pred_fallthru
    _

</llo_original>
